<compile_context>
chip_gen: v5e
topology: v5e:2x2
jax: 0.10.0
libtpu: 0.0.40
codegen_flags: <defaults>
</compile_context>

<pallas_src>
import jax
import jax.numpy as jnp
from jax.experimental import pallas as pl
from jax.experimental.pallas import tpu as pltpu


def _round_up(x, m):
    return -(-x // m) * m


def multimodal_kernel(cls_ref, img_ref,
                      wd_ref, bd_ref,            # text dense:    (H, H)  bf16, (1, H)  f32
                      wo_ref, bo_ref,            # text out_proj: (H, LP) bf16, (1, LP) f32
                      wi_ref, bi_ref,            # image head:    (TK,LP) bf16, (1, LP) f32
                      wct_ref, wci_ref, bc_ref,  # fusion Wc halves (LP,LP) bf16 + (1,LP) f32
                      out_ref,                   # (TB, LP) f32
                      acc_ref):                  # (TB, LP) f32 scratch (image matmul acc)
    k = pl.program_id(1)

    @pl.when(k == 0)
    def _init():
        acc_ref[...] = jnp.zeros_like(acc_ref)

    # Image branch: accumulate (TB, TK) @ (TK, LP) over the K grid axis, f32 acc.
    acc_ref[...] += jnp.dot(img_ref[...], wi_ref[...],
                            preferred_element_type=jnp.float32)

    @pl.when(k == pl.num_programs(1) - 1)
    def _finalize():
        # Text head (runs once per batch tile, on the last K step).
        h = jnp.tanh(
            jnp.dot(cls_ref[...], wd_ref[...],
                    preferred_element_type=jnp.float32) + bd_ref[...])
        text_logits = (jnp.dot(h.astype(jnp.bfloat16), wo_ref[...],
                               preferred_element_type=jnp.float32) + bo_ref[...])
        image_logits = acc_ref[...] + bi_ref[...]

        # classifier(relu(cat(text, image))) with the (2L, L) weight pre-split;
        # padded label columns are exactly zero, so they contribute nothing.
        zt = jnp.maximum(text_logits, 0.0).astype(jnp.bfloat16)
        zi = jnp.maximum(image_logits, 0.0).astype(jnp.bfloat16)
        out_ref[...] = (
            jnp.dot(zt, wct_ref[...], preferred_element_type=jnp.float32)
            + jnp.dot(zi, wci_ref[...], preferred_element_type=jnp.float32)
            + bc_ref[...])


@jax.jit
def multimodal_forward(feats, image, params):
    """feats: (B, S, H) f32 last-hidden-state; image: (B, C, Hi, Wi) f32 NCHW."""
    B, _, H = feats.shape
    L = params["bo"].shape[-1]
    K = image.shape[1] * image.shape[2] * image.shape[3]

    # ---- layout glue (plain JAX, outside the kernel) -------------------------
    cls = feats[:, 0, :]                 # only the CLS row -> never DMA (B,S,H)
    img = image.reshape(B, K)            # NCHW flatten -> (B, K)

    # Tile sizes: batch tile multiple of 8, K tile multiple of 128 (big tiles to
    # amortize per-step overhead), labels padded to 128 lanes so every logit /
    # output store is lane-dense.
    TB = 128 if B > 128 else _round_up(B, 8)
    PB = _round_up(B, TB)
    TK = min(2048, _round_up(K, 128))
    PK = _round_up(K, TK)
    LP = _round_up(L, 128)

    bf16, f32 = jnp.bfloat16, jnp.float32
    cls_p = jnp.pad(cls.astype(bf16), ((0, PB - B), (0, 0)))
    img_p = jnp.pad(img.astype(bf16), ((0, PB - B), (0, PK - K)))
    wd_p = params["wd"].astype(bf16)
    bd_p = params["bd"].astype(f32)
    wo_p = jnp.pad(params["wo"].astype(bf16), ((0, 0), (0, LP - L)))
    bo_p = jnp.pad(params["bo"].astype(f32), ((0, 0), (0, LP - L)))
    wi_p = jnp.pad(params["wi"].astype(bf16), ((0, PK - K), (0, LP - L)))
    bi_p = jnp.pad(params["bi"].astype(f32), ((0, 0), (0, LP - L)))
    wct_p = jnp.pad(params["wc_t"].astype(bf16), ((0, LP - L), (0, LP - L)))
    wci_p = jnp.pad(params["wc_i"].astype(bf16), ((0, LP - L), (0, LP - L)))
    bc_p = jnp.pad(params["bc"].astype(f32), ((0, 0), (0, LP - L)))

    nb, nk = PB // TB, PK // TK
    fixed = lambda i, k: (0, 0)          # resident weight / bias blocks

    cost = pl.CostEstimate(
        flops=2 * PB * (H * H + H * LP + PK * LP + 2 * LP * LP),
        transcendentals=PB * H,
        bytes_accessed=(cls_p.size + img_p.size + wd_p.size + wo_p.size
                        + wi_p.size + wct_p.size + wci_p.size) * 2
                       + (bd_p.size + bo_p.size + bi_p.size + bc_p.size) * 4
                       + PB * LP * 4)

    out = pl.pallas_call(
        multimodal_kernel,
        out_shape=jax.ShapeDtypeStruct((PB, LP), f32),
        grid=(nb, nk),
        in_specs=[
            pl.BlockSpec((TB, H), lambda i, k: (i, 0)),    # cls (resident over k)
            pl.BlockSpec((TB, TK), lambda i, k: (i, k)),   # image features
            pl.BlockSpec((H, H), fixed),                   # wd
            pl.BlockSpec((1, H), fixed),                   # bd
            pl.BlockSpec((H, LP), fixed),                  # wo
            pl.BlockSpec((1, LP), fixed),                  # bo
            pl.BlockSpec((TK, LP), lambda i, k: (k, 0)),   # wi (streamed over k)
            pl.BlockSpec((1, LP), fixed),                  # bi
            pl.BlockSpec((LP, LP), fixed),                 # wc text half
            pl.BlockSpec((LP, LP), fixed),                 # wc image half
            pl.BlockSpec((1, LP), fixed),                  # bc
        ],
        out_specs=pl.BlockSpec((TB, LP), lambda i, k: (i, 0)),
        scratch_shapes=[pltpu.VMEM((TB, LP), f32)],
        compiler_params=pltpu.CompilerParams(
            dimension_semantics=("parallel", "arbitrary"),
            vmem_limit_bytes=48 * 1024 * 1024),
        cost_estimate=cost,
    )(cls_p, img_p, wd_p, bd_p, wo_p, bo_p, wi_p, bi_p, wct_p, wci_p, bc_p)

    return out[:B, :L]


def make_params(key, hidden, num_labels, img_feat_dim):
    ks = jax.random.split(key, 9)
    s = 0.02
    return {
        "wd":  jax.random.normal(ks[0], (hidden, hidden), jnp.float32) * s,
        "bd":  jax.random.normal(ks[1], (1, hidden), jnp.float32) * s,
        "wo":  jax.random.normal(ks[2], (hidden, num_labels), jnp.float32) * s,
        "bo":  jax.random.normal(ks[3], (1, num_labels), jnp.float32) * s,
        "wi":  jax.random.normal(ks[4], (img_feat_dim, num_labels), jnp.float32) * s,
        "bi":  jax.random.normal(ks[5], (1, num_labels), jnp.float32) * s,
        # nn.Linear(num_labels*2, num_labels) split into text / image halves
        "wc_t": jax.random.normal(ks[6], (num_labels, num_labels), jnp.float32) * s,
        "wc_i": jax.random.normal(ks[7], (num_labels, num_labels), jnp.float32) * s,
        "bc":  jax.random.normal(ks[8], (1, num_labels), jnp.float32) * s,
    }


def reference_forward(feats, image, p):
    cls = feats[:, 0, :]
    h = jnp.tanh(cls @ p["wd"] + p["bd"])
    text_logits = h @ p["wo"] + p["bo"]
    image_logits = image.reshape(image.shape[0], -1) @ p["wi"] + p["bi"]
    z = jax.nn.relu(jnp.concatenate([text_logits, image_logits], axis=1))
    wc = jnp.concatenate([p["wc_t"], p["wc_i"]], axis=0)
    return z @ wc + p["bc"]


if __name__ == "__main__":
    B, S, H = 2, 8, 32          # batch, seq, hidden
    L = 4                       # num_labels
    C, Hi, Wi = 4, 16, 16       # image NCHW

    key = jax.random.PRNGKey(0)
    k_feat, k_img, k_par = jax.random.split(key, 3)

    feats = jax.random.normal(k_feat, (B, S, H), jnp.float32)
    image = jax.random.normal(k_img, (B, C, Hi, Wi), jnp.float32)
    params = make_params(k_par, H, L, C * Hi * Wi)

    out = multimodal_forward(feats, image, params)
    out = jax.block_until_ready(out)

    ref = reference_forward(feats, image, params)
    assert out.shape == (B, L), out.shape
    # bf16 MXU operands -> compare to the f32 reference at bf16-level tolerance
    assert jnp.allclose(out, ref, atol=1e-2, rtol=1e-1), float(jnp.max(jnp.abs(out - ref)))

    print("KERNEL_OK")
</pallas_src>

<mosaic_0001>
module attributes {stable_mosaic.version = 11 : i64} {
  func.func @multimodal_kernel(%arg0: i32, %arg1: i32, %arg2: memref<8x32xbf16, #tpu.memory_space<vmem>>, %arg3: memref<8x1024xbf16, #tpu.memory_space<vmem>>, %arg4: memref<32x32xbf16, #tpu.memory_space<vmem>>, %arg5: memref<1x32xf32, #tpu.memory_space<vmem>>, %arg6: memref<32x128xbf16, #tpu.memory_space<vmem>>, %arg7: memref<1x128xf32, #tpu.memory_space<vmem>>, %arg8: memref<1024x128xbf16, #tpu.memory_space<vmem>>, %arg9: memref<1x128xf32, #tpu.memory_space<vmem>>, %arg10: memref<128x128xbf16, #tpu.memory_space<vmem>>, %arg11: memref<128x128xbf16, #tpu.memory_space<vmem>>, %arg12: memref<1x128xf32, #tpu.memory_space<vmem>>, %arg13: memref<8x128xf32, #tpu.memory_space<vmem>>, %arg14: memref<8x128xf32, #tpu.memory_space<vmem>>) attributes {dimension_semantics = [#tpu.dimension_semantics<parallel>, #tpu.dimension_semantics<arbitrary>], iteration_bounds = array<i64: 1, 1>, scalar_prefetch = 0 : i64, scratch_operands = 1 : i64, tpu.core_type = #tpu.core_type<tc>, window_params = [{transform_indices = @transform_0, window_bounds = array<i64: 8, 32>}, {transform_indices = @transform_1, window_bounds = array<i64: 8, 1024>}, {pipeline_mode = #tpu.pipeline_mode<synchronous>, transform_indices = @transform_2, window_bounds = array<i64: 32, 32>}, {pipeline_mode = #tpu.pipeline_mode<synchronous>, transform_indices = @transform_3, window_bounds = array<i64: 1, 32>}, {pipeline_mode = #tpu.pipeline_mode<synchronous>, transform_indices = @transform_4, window_bounds = array<i64: 32, 128>}, {pipeline_mode = #tpu.pipeline_mode<synchronous>, transform_indices = @transform_5, window_bounds = array<i64: 1, 128>}, {transform_indices = @transform_6, window_bounds = array<i64: 1024, 128>}, {pipeline_mode = #tpu.pipeline_mode<synchronous>, transform_indices = @transform_7, window_bounds = array<i64: 1, 128>}, {pipeline_mode = #tpu.pipeline_mode<synchronous>, transform_indices = @transform_8, window_bounds = array<i64: 128, 128>}, {pipeline_mode = #tpu.pipeline_mode<synchronous>, transform_indices = @transform_9, window_bounds = array<i64: 128, 128>}, {pipeline_mode = #tpu.pipeline_mode<synchronous>, transform_indices = @transform_10, window_bounds = array<i64: 1, 128>}, {transform_indices = @transform_11, window_bounds = array<i64: 8, 128>}]} {
    %c0_i32 = arith.constant 0 : i32
    %0 = arith.cmpi eq, %arg1, %c0_i32 : i32
    %1 = arith.extui %0 : i1 to i32
    %c0_i32_0 = arith.constant 0 : i32
    %2 = arith.cmpi ne, %1, %c0_i32_0 : i32
    scf.if %2 {
      %cst_10 = arith.constant 0.000000e+00 : f32
      %12 = vector.broadcast %cst_10 : f32 to vector<8x128xf32>
      %c0_11 = arith.constant 0 : index
      %c0_12 = arith.constant 0 : index
      %13 = vector.load %arg14[%c0_11, %c0_12] : memref<8x128xf32, #tpu.memory_space<vmem>>, vector<8x128xf32>
      tpu.vector_store %arg14[%c0_11, %c0_12], %12 {strides = array<i32>} : memref<8x128xf32, #tpu.memory_space<vmem>>, vector<8x128xf32>,
    } else {
    }
    %c0 = arith.constant 0 : index
    %c0_1 = arith.constant 0 : index
    %3 = vector.load %arg14[%c0, %c0_1] : memref<8x128xf32, #tpu.memory_space<vmem>>, vector<8x128xf32>
    %c0_2 = arith.constant 0 : index
    %c0_3 = arith.constant 0 : index
    %4 = vector.load %arg3[%c0_2, %c0_3] : memref<8x1024xbf16, #tpu.memory_space<vmem>>, vector<8x1024xbf16>
    %c0_4 = arith.constant 0 : index
    %c0_5 = arith.constant 0 : index
    %5 = vector.load %arg8[%c0_4, %c0_5] : memref<1024x128xbf16, #tpu.memory_space<vmem>>, vector<1024x128xbf16>
    %cst = arith.constant dense<0.000000e+00> : vector<8x128xf32>
    %6 = tpu.matmul %4, %5, %cst {dimension_numbers = #tpu.dot_dimension_numbers<[1], [0], [0], [1], [0, 0, 1, 1], [], []>} : vector<8x1024xbf16>, vector<1024x128xbf16>, vector<8x128xf32> -> vector<8x128xf32>
    %7 = arith.addf %3, %6 : vector<8x128xf32>
    %c0_6 = arith.constant 0 : index
    %c0_7 = arith.constant 0 : index
    %8 = vector.load %arg14[%c0_6, %c0_7] : memref<8x128xf32, #tpu.memory_space<vmem>>, vector<8x128xf32>
    tpu.vector_store %arg14[%c0_6, %c0_7], %7 {strides = array<i32>} : memref<8x128xf32, #tpu.memory_space<vmem>>, vector<8x128xf32>,
    %c0_i32_8 = arith.constant 0 : i32
    %9 = arith.cmpi eq, %arg1, %c0_i32_8 : i32
    %10 = arith.extui %9 : i1 to i32
    %c0_i32_9 = arith.constant 0 : i32
    %11 = arith.cmpi ne, %10, %c0_i32_9 : i32
    scf.if %11 {
      %c0_10 = arith.constant 0 : index
      %c0_11 = arith.constant 0 : index
      %12 = vector.load %arg2[%c0_10, %c0_11] : memref<8x32xbf16, #tpu.memory_space<vmem>>, vector<8x32xbf16>
      %c0_12 = arith.constant 0 : index
      %c0_13 = arith.constant 0 : index
      %13 = vector.load %arg4[%c0_12, %c0_13] : memref<32x32xbf16, #tpu.memory_space<vmem>>, vector<32x32xbf16>
      %cst_14 = arith.constant dense<0.000000e+00> : vector<8x32xf32>
      %14 = tpu.matmul %12, %13, %cst_14 {dimension_numbers = #tpu.dot_dimension_numbers<[1], [0], [0], [1], [0, 0, 1, 1], [], []>} : vector<8x32xbf16>, vector<32x32xbf16>, vector<8x32xf32> -> vector<8x32xf32>
      %c0_15 = arith.constant 0 : index
      %c0_16 = arith.constant 0 : index
      %15 = vector.load %arg5[%c0_15, %c0_16] : memref<1x32xf32, #tpu.memory_space<vmem>>, vector<1x32xf32>
      %16 = vector.broadcast %15 : vector<1x32xf32> to vector<8x32xf32>
      %17 = arith.addf %14, %16 : vector<8x32xf32>
      %18 = math.tanh %17 : vector<8x32xf32>
      %19 = arith.truncf %18 : vector<8x32xf32> to vector<8x32xbf16>
      %c0_17 = arith.constant 0 : index
      %c0_18 = arith.constant 0 : index
      %20 = vector.load %arg6[%c0_17, %c0_18] : memref<32x128xbf16, #tpu.memory_space<vmem>>, vector<32x128xbf16>
      %cst_19 = arith.constant dense<0.000000e+00> : vector<8x128xf32>
      %21 = tpu.matmul %19, %20, %cst_19 {dimension_numbers = #tpu.dot_dimension_numbers<[1], [0], [0], [1], [0, 0, 1, 1], [], []>} : vector<8x32xbf16>, vector<32x128xbf16>, vector<8x128xf32> -> vector<8x128xf32>
      %c0_20 = arith.constant 0 : index
      %c0_21 = arith.constant 0 : index
      %22 = vector.load %arg7[%c0_20, %c0_21] : memref<1x128xf32, #tpu.memory_space<vmem>>, vector<1x128xf32>
      %23 = vector.broadcast %22 : vector<1x128xf32> to vector<8x128xf32>
      %24 = arith.addf %21, %23 : vector<8x128xf32>
      %c0_22 = arith.constant 0 : index
      %c0_23 = arith.constant 0 : index
      %25 = vector.load %arg14[%c0_22, %c0_23] : memref<8x128xf32, #tpu.memory_space<vmem>>, vector<8x128xf32>
      %c0_24 = arith.constant 0 : index
      %c0_25 = arith.constant 0 : index
      %26 = vector.load %arg9[%c0_24, %c0_25] : memref<1x128xf32, #tpu.memory_space<vmem>>, vector<1x128xf32>
      %27 = vector.broadcast %26 : vector<1x128xf32> to vector<8x128xf32>
      %28 = arith.addf %25, %27 : vector<8x128xf32>
      %cst_26 = arith.constant 0.000000e+00 : f32
      %29 = vector.broadcast %cst_26 : f32 to vector<8x128xf32>
      %30 = arith.maximumf %24, %29 : vector<8x128xf32>
      %31 = arith.truncf %30 : vector<8x128xf32> to vector<8x128xbf16>
      %cst_27 = arith.constant 0.000000e+00 : f32
      %32 = vector.broadcast %cst_27 : f32 to vector<8x128xf32>
      %33 = arith.maximumf %28, %32 : vector<8x128xf32>
      %34 = arith.truncf %33 : vector<8x128xf32> to vector<8x128xbf16>
      %c0_28 = arith.constant 0 : index
      %c0_29 = arith.constant 0 : index
      %35 = vector.load %arg10[%c0_28, %c0_29] : memref<128x128xbf16, #tpu.memory_space<vmem>>, vector<128x128xbf16>
      %cst_30 = arith.constant dense<0.000000e+00> : vector<8x128xf32>
      %36 = tpu.matmul %31, %35, %cst_30 {dimension_numbers = #tpu.dot_dimension_numbers<[1], [0], [0], [1], [0, 0, 1, 1], [], []>} : vector<8x128xbf16>, vector<128x128xbf16>, vector<8x128xf32> -> vector<8x128xf32>
      %c0_31 = arith.constant 0 : index
      %c0_32 = arith.constant 0 : index
      %37 = vector.load %arg11[%c0_31, %c0_32] : memref<128x128xbf16, #tpu.memory_space<vmem>>, vector<128x128xbf16>
      %cst_33 = arith.constant dense<0.000000e+00> : vector<8x128xf32>
      %38 = tpu.matmul %34, %37, %cst_33 {dimension_numbers = #tpu.dot_dimension_numbers<[1], [0], [0], [1], [0, 0, 1, 1], [], []>} : vector<8x128xbf16>, vector<128x128xbf16>, vector<8x128xf32> -> vector<8x128xf32>
      %39 = arith.addf %36, %38 : vector<8x128xf32>
      %c0_34 = arith.constant 0 : index
      %c0_35 = arith.constant 0 : index
      %40 = vector.load %arg12[%c0_34, %c0_35] : memref<1x128xf32, #tpu.memory_space<vmem>>, vector<1x128xf32>
      %41 = vector.broadcast %40 : vector<1x128xf32> to vector<8x128xf32>
      %42 = arith.addf %39, %41 : vector<8x128xf32>
      %c0_36 = arith.constant 0 : index
      %c0_37 = arith.constant 0 : index
      %43 = vector.load %arg13[%c0_36, %c0_37] : memref<8x128xf32, #tpu.memory_space<vmem>>, vector<8x128xf32>
      tpu.vector_store %arg13[%c0_36, %c0_37], %42 {strides = array<i32>} : memref<8x128xf32, #tpu.memory_space<vmem>>, vector<8x128xf32>,
    } else {
    }
    return
  }
  func.func @transform_0(%arg0: i32, %arg1: i32) -> (i32, i32) {
    %c0_i32 = arith.constant 0 : i32
    %c0_i32_0 = arith.constant 0 : i32
    return %arg0, %c0_i32 : i32, i32
  }
  func.func @transform_1(%arg0: i32, %arg1: i32) -> (i32, i32) {
    %c0_i32 = arith.constant 0 : i32
    return %arg0, %arg1 : i32, i32
  }
  func.func @transform_2(%arg0: i32, %arg1: i32) -> (i32, i32) {
    %c0_i32 = arith.constant 0 : i32
    %c0_i32_0 = arith.constant 0 : i32
    %c0_i32_1 = arith.constant 0 : i32
    return %c0_i32, %c0_i32_0 : i32, i32
  }
  func.func @transform_3(%arg0: i32, %arg1: i32) -> (i32, i32) {
    %c0_i32 = arith.constant 0 : i32
    %c0_i32_0 = arith.constant 0 : i32
    %c0_i32_1 = arith.constant 0 : i32
    return %c0_i32, %c0_i32_0 : i32, i32
  }
  func.func @transform_4(%arg0: i32, %arg1: i32) -> (i32, i32) {
    %c0_i32 = arith.constant 0 : i32
    %c0_i32_0 = arith.constant 0 : i32
    %c0_i32_1 = arith.constant 0 : i32
    return %c0_i32, %c0_i32_0 : i32, i32
  }
  func.func @transform_5(%arg0: i32, %arg1: i32) -> (i32, i32) {
    %c0_i32 = arith.constant 0 : i32
    %c0_i32_0 = arith.constant 0 : i32
    %c0_i32_1 = arith.constant 0 : i32
    return %c0_i32, %c0_i32_0 : i32, i32
  }
  func.func @transform_6(%arg0: i32, %arg1: i32) -> (i32, i32) {
    %c0_i32 = arith.constant 0 : i32
    %c0_i32_0 = arith.constant 0 : i32
    return %arg1, %c0_i32 : i32, i32
  }
  func.func @transform_7(%arg0: i32, %arg1: i32) -> (i32, i32) {
    %c0_i32 = arith.constant 0 : i32
    %c0_i32_0 = arith.constant 0 : i32
    %c0_i32_1 = arith.constant 0 : i32
    return %c0_i32, %c0_i32_0 : i32, i32
  }
  func.func @transform_8(%arg0: i32, %arg1: i32) -> (i32, i32) {
    %c0_i32 = arith.constant 0 : i32
    %c0_i32_0 = arith.constant 0 : i32
    %c0_i32_1 = arith.constant 0 : i32
    return %c0_i32, %c0_i32_0 : i32, i32
  }
  func.func @transform_9(%arg0: i32, %arg1: i32) -> (i32, i32) {
    %c0_i32 = arith.constant 0 : i32
    %c0_i32_0 = arith.constant 0 : i32
    %c0_i32_1 = arith.constant 0 : i32
    return %c0_i32, %c0_i32_0 : i32, i32
  }
  func.func @transform_10(%arg0: i32, %arg1: i32) -> (i32, i32) {
    %c0_i32 = arith.constant 0 : i32
    %c0_i32_0 = arith.constant 0 : i32
    %c0_i32_1 = arith.constant 0 : i32
    return %c0_i32, %c0_i32_0 : i32, i32
  }
  func.func @transform_11(%arg0: i32, %arg1: i32) -> (i32, i32) {
    %c0_i32 = arith.constant 0 : i32
    %c0_i32_0 = arith.constant 0 : i32
    return %arg0, %c0_i32 : i32, i32
  }
}

</mosaic_0001>

<llo_original>
// kernel: multimodal_forward.1
$region0: #{multimodal_forward.1}
  #allocation0 [shape = 'u32[]', space=smem, size = 0x4, offset = 0x4, fixed_abs, tag = 'smem constant byte address 0x4 - core index']
  #allocation1 [shape = 'u32[72,128]{1,0:T(1,128)}', space=vmem, size = 0x9000, scoped, tag = 'internal scratch']
  #allocation2 [shape = 'f32[8,128]{1,0:T(8,128)}', space=vmem, size = 0x1000, scoped, tag = 'scratch operand']
  %s0 = inlined_call_operand.vmem [shape: bf16[8,32], index: 0, kind: input, shape index: {}]
  %s1 = inlined_call_operand.vmem [shape: bf16[8,1024], index: 1, kind: input, shape index: {}]
  %s2 = inlined_call_operand.vmem [shape: bf16[32,32], index: 2, kind: input, shape index: {}]
  %s3 = inlined_call_operand.vmem [shape: f32[1,32], index: 3, kind: input, shape index: {}]
  %s4 = inlined_call_operand.vmem [shape: bf16[32,128], index: 4, kind: input, shape index: {}]
  %s5 = inlined_call_operand.vmem [shape: f32[1,128], index: 5, kind: input, shape index: {}]
  %s6 = inlined_call_operand.vmem [shape: bf16[1024,128], index: 6, kind: input, shape index: {}]
  %s7 = inlined_call_operand.vmem [shape: f32[1,128], index: 7, kind: input, shape index: {}]
  %s8 = inlined_call_operand.vmem [shape: bf16[128,128], index: 8, kind: input, shape index: {}]
  %s9 = inlined_call_operand.vmem [shape: bf16[128,128], index: 9, kind: input, shape index: {}]
  %s10 = inlined_call_operand.vmem [shape: f32[1,128], index: 10, kind: input, shape index: {}]
  %s11 = inlined_call_operand.vmem [shape: f32[8,128], index: 11, kind: output, shape index: {}]
  %s12 = sld [smem:[#allocation0]]
  $region62: #{multimodal_forward.1} parent=0
    _
  %s14 = ssub.s32 1, %s12
  %s15 = scalar_select 0, %s14, %s12
  // Predicated region
  $region2: #{multimodal_forward.1} parent=0 // pred_check
    _
  $region3: #{multimodal_forward.1} parent=0 // pred_check_branch
    %17 = sbr.rel (0) target = $region5
  $region4: #{multimodal_forward.1} parent=0 // pred_region
    _
  $region5: #{multimodal_forward.1} parent=0 // pred_fallthru
    _
  // Predicated region
  $region6: #{multimodal_forward.1} parent=0 // pred_check
    _
  $region7: #{multimodal_forward.1} parent=0 // pred_check_branch
    %19 = sbr.rel (0) target = $region9
  $region8: #{multimodal_forward.1} parent=0 // pred_region
    _
  $region9: #{multimodal_forward.1} parent=0 // pred_fallthru
    _
  // Predicated region
  $region10: #{multimodal_forward.1} parent=0 // pred_check
    _
  $region11: #{multimodal_forward.1} parent=0 // pred_check_branch
    %21 = sbr.rel (0) target = $region13
  $region12: #{multimodal_forward.1} parent=0 // pred_region
    _
  $region13: #{multimodal_forward.1} parent=0 // pred_fallthru
    _
  // Predicated region
  $region14: #{multimodal_forward.1} parent=0 // pred_check
    _
  $region15: #{multimodal_forward.1} parent=0 // pred_check_branch
    %23 = sbr.rel (0) target = $region17
  $region16: #{multimodal_forward.1} parent=0 // pred_region
    _
  $region17: #{multimodal_forward.1} parent=0 // pred_fallthru
    _
  // Predicated region
  $region18: #{multimodal_forward.1} parent=0 // pred_check
    _
  $region19: #{multimodal_forward.1} parent=0 // pred_check_branch
    %25 = sbr.rel (0) target = $region21
  $region20: #{multimodal_forward.1} parent=0 // pred_region
    _
  $region21: #{multimodal_forward.1} parent=0 // pred_fallthru
    _
  // Predicated region
  $region22: #{multimodal_forward.1} parent=0 // pred_check
    _
  $region23: #{multimodal_forward.1} parent=0 // pred_check_branch
    %27 = sbr.rel (0) target = $region25
  $region24: #{multimodal_forward.1} parent=0 // pred_region
    _
  $region25: #{multimodal_forward.1} parent=0 // pred_fallthru
    _
  // Predicated region
  $region26: #{multimodal_forward.1} parent=0 // pred_check
    _
  $region27: #{multimodal_forward.1} parent=0 // pred_check_branch
    %29 = sbr.rel (0) target = $region29
  $region28: #{multimodal_forward.1} parent=0 // pred_region
    _
  $region29: #{multimodal_forward.1} parent=0 // pred_fallthru
    _
  // Predicated region
  $region30: #{multimodal_forward.1} parent=0 // pred_check
    _
  $region31: #{multimodal_forward.1} parent=0 // pred_check_branch
    %31 = sbr.rel (0) target = $region33
  $region32: #{multimodal_forward.1} parent=0 // pred_region
    _
  $region33: #{multimodal_forward.1} parent=0 // pred_fallthru
    _
  // Predicated region
  $region34: #{multimodal_forward.1} parent=0 // pred_check
    _
  $region35: #{multimodal_forward.1} parent=0 // pred_check_branch
    %33 = sbr.rel (0) target = $region37
  $region36: #{multimodal_forward.1} parent=0 // pred_region
    _
  $region37: #{multimodal_forward.1} parent=0 // pred_fallthru
    _
  // Predicated region
  $region38: #{multimodal_forward.1} parent=0 // pred_check
    _
  $region39: #{multimodal_forward.1} parent=0 // pred_check_branch
    %35 = sbr.rel (0) target = $region41
  $region40: #{multimodal_forward.1} parent=0 // pred_region
    _
  $region41: #{multimodal_forward.1} parent=0 // pred_fallthru
    _
  // Predicated region
  $region42: #{multimodal_forward.1} parent=0 // pred_check
    _
  $region43: #{multimodal_forward.1} parent=0 // pred_check_branch
    %37 = sbr.rel (0) target = $region45
  $region44: #{multimodal_forward.1} parent=0 // pred_region
    _
  $region45: #{multimodal_forward.1} parent=0 // pred_fallthru
    _
  %p39 = scmp.eq.s32.totalorder 0, 0
  // Predicated region
  $region46: #{multimodal_forward.1} parent=0 // pred_check
    %p40 = pneg %p39
  $region47: #{multimodal_forward.1} parent=0 // pred_check_branch
    %42 = sbr.rel (%p40) target = $region49
  $region48: #{multimodal_forward.1} parent=0 // pred_region
    %43 = vst [vmem:[#allocation2] sm:$0xff] 0.0
  $region49: #{multimodal_forward.1} parent=0 // pred_fallthru
    _
  %v44 = vld [vmem:[#allocation2] sm:$0xff]
  %v45 = vld [vmem:[%s1] sm:$0xff]
  %v46 = vld [vmem:[%s1 + $0x8] sm:$0xff]
  %v47 = vld [vmem:[%s1 + $0x10] sm:$0xff]
  %v48 = vld [vmem:[%s1 + $0x18] sm:$0xff]
  %v49 = vld [vmem:[%s6] sm:$0xf]
  %v50 = vld [vmem:[%s6 + $0x4] sm:$0xf]
  %v51 = vld [vmem:[%s6 + $0x8] sm:$0xf]
  %v52 = vld [vmem:[%s6 + $0xc] sm:$0xf]
  %v53 = vld [vmem:[%s6 + $0x10] sm:$0xf]
  %v54 = vld [vmem:[%s6 + $0x14] sm:$0xf]
  %v55 = vld [vmem:[%s6 + $0x18] sm:$0xf]
  %v56 = vld [vmem:[%s6 + $0x1c] sm:$0xf]
  %v57 = vld [vmem:[%s6 + $0x20] sm:$0xf]
  %v58 = vld [vmem:[%s6 + $0x24] sm:$0xf]
  %v59 = vld [vmem:[%s6 + $0x28] sm:$0xf]
  %v60 = vld [vmem:[%s6 + $0x2c] sm:$0xf]
  %v61 = vld [vmem:[%s6 + $0x30] sm:$0xf]
  %v62 = vld [vmem:[%s6 + $0x34] sm:$0xf]
  %v63 = vld [vmem:[%s6 + $0x38] sm:$0xf]
  %v64 = vld [vmem:[%s6 + $0x3c] sm:$0xf]
  %v65 = vld [vmem:[%s6 + $0x40] sm:$0xf]
  %v66 = vld [vmem:[%s6 + $0x44] sm:$0xf]
  %v67 = vld [vmem:[%s6 + $0x48] sm:$0xf]
  %v68 = vld [vmem:[%s6 + $0x4c] sm:$0xf]
  %v69 = vld [vmem:[%s6 + $0x50] sm:$0xf]
  %v70 = vld [vmem:[%s6 + $0x54] sm:$0xf]
  %v71 = vld [vmem:[%s6 + $0x58] sm:$0xf]
  %v72 = vld [vmem:[%s6 + $0x5c] sm:$0xf]
  %v73 = vld [vmem:[%s6 + $0x60] sm:$0xf]
  %v74 = vld [vmem:[%s6 + $0x64] sm:$0xf]
  %v75 = vld [vmem:[%s6 + $0x68] sm:$0xf]
  %v76 = vld [vmem:[%s6 + $0x6c] sm:$0xf]
  %v77 = vld [vmem:[%s6 + $0x70] sm:$0xf]
  %v78 = vld [vmem:[%s6 + $0x74] sm:$0xf]
  %v79 = vld [vmem:[%s6 + $0x78] sm:$0xf]
  %v80 = vld [vmem:[%s6 + $0x7c] sm:$0xf]
  %v81 = vld [vmem:[%s6 + $0x80] sm:$0xf]
  %v82 = vld [vmem:[%s6 + $0x84] sm:$0xf]
  %v83 = vld [vmem:[%s6 + $0x88] sm:$0xf]
  %v84 = vld [vmem:[%s6 + $0x8c] sm:$0xf]
  %v85 = vld [vmem:[%s6 + $0x90] sm:$0xf]
  %v86 = vld [vmem:[%s6 + $0x94] sm:$0xf]
  %v87 = vld [vmem:[%s6 + $0x98] sm:$0xf]
  %v88 = vld [vmem:[%s6 + $0x9c] sm:$0xf]
  %v89 = vld [vmem:[%s6 + $0xa0] sm:$0xf]
  %v90 = vld [vmem:[%s6 + $0xa4] sm:$0xf]
  %v91 = vld [vmem:[%s6 + $0xa8] sm:$0xf]
  %v92 = vld [vmem:[%s6 + $0xac] sm:$0xf]
  %v93 = vld [vmem:[%s6 + $0xb0] sm:$0xf]
  %v94 = vld [vmem:[%s6 + $0xb4] sm:$0xf]
  %v95 = vld [vmem:[%s6 + $0xb8] sm:$0xf]
  %v96 = vld [vmem:[%s6 + $0xbc] sm:$0xf]
  %v97 = vld [vmem:[%s6 + $0xc0] sm:$0xf]
  %v98 = vld [vmem:[%s6 + $0xc4] sm:$0xf]
  %v99 = vld [vmem:[%s6 + $0xc8] sm:$0xf]
  %v100 = vld [vmem:[%s6 + $0xcc] sm:$0xf]
  %v101 = vld [vmem:[%s6 + $0xd0] sm:$0xf]
  %v102 = vld [vmem:[%s6 + $0xd4] sm:$0xf]
  %v103 = vld [vmem:[%s6 + $0xd8] sm:$0xf]
  %v104 = vld [vmem:[%s6 + $0xdc] sm:$0xf]
  %v105 = vld [vmem:[%s6 + $0xe0] sm:$0xf]
  %v106 = vld [vmem:[%s6 + $0xe4] sm:$0xf]
  %v107 = vld [vmem:[%s6 + $0xe8] sm:$0xf]
  %v108 = vld [vmem:[%s6 + $0xec] sm:$0xf]
  %v109 = vld [vmem:[%s6 + $0xf0] sm:$0xf]
  %v110 = vld [vmem:[%s6 + $0xf4] sm:$0xf]
  %v111 = vld [vmem:[%s6 + $0xf8] sm:$0xf]
  %v112 = vld [vmem:[%s6 + $0xfc] sm:$0xf]
  %v113 = vld [vmem:[%s6 + $0x100] sm:$0xf]
  %v114 = vld [vmem:[%s6 + $0x104] sm:$0xf]
  %v115 = vld [vmem:[%s6 + $0x108] sm:$0xf]
  %v116 = vld [vmem:[%s6 + $0x10c] sm:$0xf]
  %v117 = vld [vmem:[%s6 + $0x110] sm:$0xf]
  %v118 = vld [vmem:[%s6 + $0x114] sm:$0xf]
  %v119 = vld [vmem:[%s6 + $0x118] sm:$0xf]
  %v120 = vld [vmem:[%s6 + $0x11c] sm:$0xf]
  %v121 = vld [vmem:[%s6 + $0x120] sm:$0xf]
  %v122 = vld [vmem:[%s6 + $0x124] sm:$0xf]
  %v123 = vld [vmem:[%s6 + $0x128] sm:$0xf]
  %v124 = vld [vmem:[%s6 + $0x12c] sm:$0xf]
  %v125 = vld [vmem:[%s6 + $0x130] sm:$0xf]
  %v126 = vld [vmem:[%s6 + $0x134] sm:$0xf]
  %v127 = vld [vmem:[%s6 + $0x138] sm:$0xf]
  %v128 = vld [vmem:[%s6 + $0x13c] sm:$0xf]
  %v129 = vld [vmem:[%s6 + $0x140] sm:$0xf]
  %v130 = vld [vmem:[%s6 + $0x144] sm:$0xf]
  %v131 = vld [vmem:[%s6 + $0x148] sm:$0xf]
  %v132 = vld [vmem:[%s6 + $0x14c] sm:$0xf]
  %v133 = vld [vmem:[%s6 + $0x150] sm:$0xf]
  %v134 = vld [vmem:[%s6 + $0x154] sm:$0xf]
  %v135 = vld [vmem:[%s6 + $0x158] sm:$0xf]
  %v136 = vld [vmem:[%s6 + $0x15c] sm:$0xf]
  %v137 = vld [vmem:[%s6 + $0x160] sm:$0xf]
  %v138 = vld [vmem:[%s6 + $0x164] sm:$0xf]
  %v139 = vld [vmem:[%s6 + $0x168] sm:$0xf]
  %v140 = vld [vmem:[%s6 + $0x16c] sm:$0xf]
  %v141 = vld [vmem:[%s6 + $0x170] sm:$0xf]
  %v142 = vld [vmem:[%s6 + $0x174] sm:$0xf]
  %v143 = vld [vmem:[%s6 + $0x178] sm:$0xf]
  %v144 = vld [vmem:[%s6 + $0x17c] sm:$0xf]
  %v145 = vld [vmem:[%s6 + $0x180] sm:$0xf]
  %v146 = vld [vmem:[%s6 + $0x184] sm:$0xf]
  %v147 = vld [vmem:[%s6 + $0x188] sm:$0xf]
  %v148 = vld [vmem:[%s6 + $0x18c] sm:$0xf]
  %v149 = vld [vmem:[%s6 + $0x190] sm:$0xf]
  %v150 = vld [vmem:[%s6 + $0x194] sm:$0xf]
  %v151 = vld [vmem:[%s6 + $0x198] sm:$0xf]
  %v152 = vld [vmem:[%s6 + $0x19c] sm:$0xf]
  %v153 = vld [vmem:[%s6 + $0x1a0] sm:$0xf]
  %v154 = vld [vmem:[%s6 + $0x1a4] sm:$0xf]
  %v155 = vld [vmem:[%s6 + $0x1a8] sm:$0xf]
  %v156 = vld [vmem:[%s6 + $0x1ac] sm:$0xf]
  %v157 = vld [vmem:[%s6 + $0x1b0] sm:$0xf]
  %v158 = vld [vmem:[%s6 + $0x1b4] sm:$0xf]
  %v159 = vld [vmem:[%s6 + $0x1b8] sm:$0xf]
  %v160 = vld [vmem:[%s6 + $0x1bc] sm:$0xf]
  %v161 = vld [vmem:[%s6 + $0x1c0] sm:$0xf]
  %v162 = vld [vmem:[%s6 + $0x1c4] sm:$0xf]
  %v163 = vld [vmem:[%s6 + $0x1c8] sm:$0xf]
  %v164 = vld [vmem:[%s6 + $0x1cc] sm:$0xf]
  %v165 = vld [vmem:[%s6 + $0x1d0] sm:$0xf]
  %v166 = vld [vmem:[%s6 + $0x1d4] sm:$0xf]
  %v167 = vld [vmem:[%s6 + $0x1d8] sm:$0xf]
  %v168 = vld [vmem:[%s6 + $0x1dc] sm:$0xf]
  %v169 = vld [vmem:[%s6 + $0x1e0] sm:$0xf]
  %v170 = vld [vmem:[%s6 + $0x1e4] sm:$0xf]
  %v171 = vld [vmem:[%s6 + $0x1e8] sm:$0xf]
  %v172 = vld [vmem:[%s6 + $0x1ec] sm:$0xf]
  %v173 = vld [vmem:[%s6 + $0x1f0] sm:$0xf]
  %v174 = vld [vmem:[%s6 + $0x1f4] sm:$0xf]
  %v175 = vld [vmem:[%s6 + $0x1f8] sm:$0xf]
  %v176 = vld [vmem:[%s6 + $0x1fc] sm:$0xf]
  %v181 = vunpack.c.l.b16 %v45
  %v182 = vunpack.c.h.b16 %v45
  %v183 = vunpack.c.l.b16 %v46
  %v184 = vunpack.c.h.b16 %v46
  %v185 = vunpack.c.l.b16 %v47
  %v186 = vunpack.c.h.b16 %v47
  %v187 = vunpack.c.l.b16 %v48
  %v188 = vunpack.c.h.b16 %v48
  %v189 = vpack.c.b16 %v181, %v181
  %v190 = vpack.c.b16 %v182, %v182
  %v191 = vpack.c.b16 %v183, %v183
  %v192 = vpack.c.b16 %v184, %v184
  %v193 = vpack.c.b16 %v185, %v185
  %v194 = vpack.c.b16 %v186, %v186
  %v195 = vpack.c.b16 %v187, %v187
  %v196 = vpack.c.b16 %v188, %v188
  %v333 = vunpack.c.l.b16 %v49
  %v334 = vunpack.c.l.b16 %v50
  %v335 = vunpack.c.l.b16 %v51
  %v336 = vunpack.c.l.b16 %v52
  %v337 = vunpack.c.l.b16 %v53
  %v338 = vunpack.c.l.b16 %v54
  %v339 = vunpack.c.l.b16 %v55
  %v340 = vunpack.c.l.b16 %v56
  %v341 = vunpack.c.l.b16 %v57
  %v342 = vunpack.c.l.b16 %v58
  %v343 = vunpack.c.l.b16 %v59
  %v344 = vunpack.c.l.b16 %v60
  %v345 = vunpack.c.l.b16 %v61
  %v346 = vunpack.c.l.b16 %v62
  %v347 = vunpack.c.l.b16 %v63
  %v348 = vunpack.c.l.b16 %v64
  %v349 = vunpack.c.l.b16 %v65
  %v350 = vunpack.c.l.b16 %v66
  %v351 = vunpack.c.l.b16 %v67
  %v352 = vunpack.c.l.b16 %v68
  %v353 = vunpack.c.l.b16 %v69
  %v354 = vunpack.c.l.b16 %v70
  %v355 = vunpack.c.l.b16 %v71
  %v356 = vunpack.c.l.b16 %v72
  %v357 = vunpack.c.l.b16 %v73
  %v358 = vunpack.c.l.b16 %v74
  %v359 = vunpack.c.l.b16 %v75
  %v360 = vunpack.c.l.b16 %v76
  %v361 = vunpack.c.l.b16 %v77
  %v362 = vunpack.c.l.b16 %v78
  %v363 = vunpack.c.l.b16 %v79
  %v364 = vunpack.c.l.b16 %v80
  %v365 = vunpack.c.l.b16 %v81
  %v366 = vunpack.c.l.b16 %v82
  %v367 = vunpack.c.l.b16 %v83
  %v368 = vunpack.c.l.b16 %v84
  %v369 = vunpack.c.l.b16 %v85
  %v370 = vunpack.c.l.b16 %v86
  %v371 = vunpack.c.l.b16 %v87
  %v372 = vunpack.c.l.b16 %v88
  %v373 = vunpack.c.l.b16 %v89
  %v374 = vunpack.c.l.b16 %v90
  %v375 = vunpack.c.l.b16 %v91
  %v376 = vunpack.c.l.b16 %v92
  %v377 = vunpack.c.l.b16 %v93
  %v378 = vunpack.c.l.b16 %v94
  %v379 = vunpack.c.l.b16 %v95
  %v380 = vunpack.c.l.b16 %v96
  %v381 = vunpack.c.l.b16 %v97
  %v382 = vunpack.c.l.b16 %v98
  %v383 = vunpack.c.l.b16 %v99
  %v384 = vunpack.c.l.b16 %v100
  %v385 = vunpack.c.l.b16 %v101
  %v386 = vunpack.c.l.b16 %v102
  %v387 = vunpack.c.l.b16 %v103
  %v388 = vunpack.c.l.b16 %v104
  %v389 = vunpack.c.l.b16 %v105
  %v390 = vunpack.c.l.b16 %v106
  %v391 = vunpack.c.l.b16 %v107
  %v392 = vunpack.c.l.b16 %v108
  %v393 = vunpack.c.l.b16 %v109
  %v394 = vunpack.c.l.b16 %v110
  %v395 = vunpack.c.l.b16 %v111
  %v396 = vunpack.c.l.b16 %v112
  %v397 = vunpack.c.l.b16 %v113
  %v398 = vunpack.c.l.b16 %v114
  %v399 = vunpack.c.l.b16 %v115
  %v400 = vunpack.c.l.b16 %v116
  %v401 = vunpack.c.l.b16 %v117
  %v402 = vunpack.c.l.b16 %v118
  %v403 = vunpack.c.l.b16 %v119
  %v404 = vunpack.c.l.b16 %v120
  %v405 = vunpack.c.l.b16 %v121
  %v406 = vunpack.c.l.b16 %v122
  %v407 = vunpack.c.l.b16 %v123
  %v408 = vunpack.c.l.b16 %v124
  %v409 = vunpack.c.l.b16 %v125
  %v410 = vunpack.c.l.b16 %v126
  %v411 = vunpack.c.l.b16 %v127
  %v412 = vunpack.c.l.b16 %v128
  %v413 = vunpack.c.l.b16 %v129
  %v414 = vunpack.c.l.b16 %v130
  %v415 = vunpack.c.l.b16 %v131
  %v416 = vunpack.c.l.b16 %v132
  %v417 = vunpack.c.l.b16 %v133
  %v418 = vunpack.c.l.b16 %v134
  %v419 = vunpack.c.l.b16 %v135
  %v420 = vunpack.c.l.b16 %v136
  %v421 = vunpack.c.l.b16 %v137
  %v422 = vunpack.c.l.b16 %v138
  %v423 = vunpack.c.l.b16 %v139
  %v424 = vunpack.c.l.b16 %v140
  %v425 = vunpack.c.l.b16 %v141
  %v426 = vunpack.c.l.b16 %v142
  %v427 = vunpack.c.l.b16 %v143
  %v428 = vunpack.c.l.b16 %v144
  %v429 = vunpack.c.l.b16 %v145
  %v430 = vunpack.c.l.b16 %v146
  %v431 = vunpack.c.l.b16 %v147
  %v432 = vunpack.c.l.b16 %v148
  %v433 = vunpack.c.l.b16 %v149
  %v434 = vunpack.c.l.b16 %v150
  %v435 = vunpack.c.l.b16 %v151
  %v436 = vunpack.c.l.b16 %v152
  %v437 = vunpack.c.l.b16 %v153
  %v438 = vunpack.c.l.b16 %v154
  %v439 = vunpack.c.l.b16 %v155
  %v440 = vunpack.c.l.b16 %v156
  %v441 = vunpack.c.l.b16 %v157
  %v442 = vunpack.c.l.b16 %v158
  %v443 = vunpack.c.l.b16 %v159
  %v444 = vunpack.c.l.b16 %v160
  %v445 = vunpack.c.l.b16 %v161
  %v446 = vunpack.c.l.b16 %v162
  %v447 = vunpack.c.l.b16 %v163
  %v448 = vunpack.c.l.b16 %v164
  %v449 = vunpack.c.l.b16 %v165
  %v450 = vunpack.c.l.b16 %v166
  %v451 = vunpack.c.l.b16 %v167
  %v452 = vunpack.c.l.b16 %v168
  %v453 = vunpack.c.l.b16 %v169
  %v454 = vunpack.c.l.b16 %v170
  %v455 = vunpack.c.l.b16 %v171
  %v456 = vunpack.c.l.b16 %v172
  %v457 = vunpack.c.l.b16 %v173
  %v458 = vunpack.c.l.b16 %v174
  %v459 = vunpack.c.l.b16 %v175
  %v460 = vunpack.c.l.b16 %v176
  %v461 = vpack.c.b16 %v334, %v333
  %v462 = vpack.c.b16 %v336, %v335
  %v463 = vpack.c.b16 %v338, %v337
  %v464 = vpack.c.b16 %v340, %v339
  %v465 = vpack.c.b16 %v342, %v341
  %v466 = vpack.c.b16 %v344, %v343
  %v467 = vpack.c.b16 %v346, %v345
  %v468 = vpack.c.b16 %v348, %v347
  %v469 = vpack.c.b16 %v350, %v349
  %v470 = vpack.c.b16 %v352, %v351
  %v471 = vpack.c.b16 %v354, %v353
  %v472 = vpack.c.b16 %v356, %v355
  %v473 = vpack.c.b16 %v358, %v357
  %v474 = vpack.c.b16 %v360, %v359
  %v475 = vpack.c.b16 %v362, %v361
  %v476 = vpack.c.b16 %v364, %v363
  %v477 = vpack.c.b16 %v366, %v365
  %v478 = vpack.c.b16 %v368, %v367
  %v479 = vpack.c.b16 %v370, %v369
  %v480 = vpack.c.b16 %v372, %v371
  %v481 = vpack.c.b16 %v374, %v373
  %v482 = vpack.c.b16 %v376, %v375
  %v483 = vpack.c.b16 %v378, %v377
  %v484 = vpack.c.b16 %v380, %v379
  %v485 = vpack.c.b16 %v382, %v381
  %v486 = vpack.c.b16 %v384, %v383
  %v487 = vpack.c.b16 %v386, %v385
  %v488 = vpack.c.b16 %v388, %v387
  %v489 = vpack.c.b16 %v390, %v389
  %v490 = vpack.c.b16 %v392, %v391
  %v491 = vpack.c.b16 %v394, %v393
  %v492 = vpack.c.b16 %v396, %v395
  %v493 = vpack.c.b16 %v398, %v397
  %v494 = vpack.c.b16 %v400, %v399
  %v495 = vpack.c.b16 %v402, %v401
  %v496 = vpack.c.b16 %v404, %v403
  %v497 = vpack.c.b16 %v406, %v405
  %v498 = vpack.c.b16 %v408, %v407
  %v499 = vpack.c.b16 %v410, %v409
  %v500 = vpack.c.b16 %v412, %v411
  %v501 = vpack.c.b16 %v414, %v413
  %v502 = vpack.c.b16 %v416, %v415
  %v503 = vpack.c.b16 %v418, %v417
  %v504 = vpack.c.b16 %v420, %v419
  %v505 = vpack.c.b16 %v422, %v421
  %v506 = vpack.c.b16 %v424, %v423
  %v507 = vpack.c.b16 %v426, %v425
  %v508 = vpack.c.b16 %v428, %v427
  %v509 = vpack.c.b16 %v430, %v429
  %v510 = vpack.c.b16 %v432, %v431
  %v511 = vpack.c.b16 %v434, %v433
  %v512 = vpack.c.b16 %v436, %v435
  %v513 = vpack.c.b16 %v438, %v437
  %v514 = vpack.c.b16 %v440, %v439
  %v515 = vpack.c.b16 %v442, %v441
  %v516 = vpack.c.b16 %v444, %v443
  %v517 = vpack.c.b16 %v446, %v445
  %v518 = vpack.c.b16 %v448, %v447
  %v519 = vpack.c.b16 %v450, %v449
  %v520 = vpack.c.b16 %v452, %v451
  %v521 = vpack.c.b16 %v454, %v453
  %v522 = vpack.c.b16 %v456, %v455
  %v523 = vpack.c.b16 %v458, %v457
  %v524 = vpack.c.b16 %v460, %v459
  %589 = vmatpush.bf16.msra.mxu0 %v468
  %590 = vmatpush.bf16.msra.mxu0 %v467
  %591 = vmatpush.bf16.msra.mxu0 %v466
  %592 = vmatpush.bf16.msra.mxu0 %v465
  %593 = vmatpush.bf16.msra.mxu0 %v464
  %594 = vmatpush.bf16.msra.mxu0 %v463
  %595 = vmatpush.bf16.msra.mxu0 %v462
  %596 = vmatpush.bf16.msra.mxu0 %v461
  %597 = vmatmul.bf16.gmra.mxu0 %v189
  %v598 = vpop.f32.mrf.mxu0
  %v599 = vadd.f32 0.0, %v598
  %v600 = vpop.f32.mrf.mxu0
  %601 = vdwg.mxu0
  %602 = vmatpush.bf16.msra.mxu0 %v476
  %603 = vmatpush.bf16.msra.mxu0 %v475
  %604 = vmatpush.bf16.msra.mxu0 %v474
  %605 = vmatpush.bf16.msra.mxu0 %v473
  %606 = vmatpush.bf16.msra.mxu0 %v472
  %607 = vmatpush.bf16.msra.mxu0 %v471
  %608 = vmatpush.bf16.msra.mxu0 %v470
  %609 = vmatpush.bf16.msra.mxu0 %v469
  %610 = vmatmul.bf16.gmra.mxu0 %v190
  %v611 = vpop.f32.mrf.mxu0
  %v612 = vadd.f32 %v599, %v611
  %v613 = vpop.f32.mrf.mxu0
  %614 = vdwg.mxu0
  %615 = vmatpush.bf16.msra.mxu0 %v484
  %616 = vmatpush.bf16.msra.mxu0 %v483
  %617 = vmatpush.bf16.msra.mxu0 %v482
  %618 = vmatpush.bf16.msra.mxu0 %v481
  %619 = vmatpush.bf16.msra.mxu0 %v480
  %620 = vmatpush.bf16.msra.mxu0 %v479
  %621 = vmatpush.bf16.msra.mxu0 %v478
  %622 = vmatpush.bf16.msra.mxu0 %v477
  %623 = vmatmul.bf16.gmra.mxu0 %v191
  %v624 = vpop.f32.mrf.mxu0
  %v625 = vadd.f32 %v612, %v624
  %v626 = vpop.f32.mrf.mxu0
  %627 = vdwg.mxu0
  %628 = vmatpush.bf16.msra.mxu0 %v492
  %629 = vmatpush.bf16.msra.mxu0 %v491
  %630 = vmatpush.bf16.msra.mxu0 %v490
  %631 = vmatpush.bf16.msra.mxu0 %v489
  %632 = vmatpush.bf16.msra.mxu0 %v488
  %633 = vmatpush.bf16.msra.mxu0 %v487
  %634 = vmatpush.bf16.msra.mxu0 %v486
  %635 = vmatpush.bf16.msra.mxu0 %v485
  %636 = vmatmul.bf16.gmra.mxu0 %v192
  %v637 = vpop.f32.mrf.mxu0
  %v638 = vadd.f32 %v625, %v637
  %v639 = vpop.f32.mrf.mxu0
  %640 = vdwg.mxu0
  %641 = vmatpush.bf16.msra.mxu0 %v500
  %642 = vmatpush.bf16.msra.mxu0 %v499
  %643 = vmatpush.bf16.msra.mxu0 %v498
  %644 = vmatpush.bf16.msra.mxu0 %v497
  %645 = vmatpush.bf16.msra.mxu0 %v496
  %646 = vmatpush.bf16.msra.mxu0 %v495
  %647 = vmatpush.bf16.msra.mxu0 %v494
  %648 = vmatpush.bf16.msra.mxu0 %v493
  %649 = vmatmul.bf16.gmra.mxu0 %v193
  %v650 = vpop.f32.mrf.mxu0
  %v651 = vadd.f32 %v638, %v650
  %v652 = vpop.f32.mrf.mxu0
  %653 = vdwg.mxu0
  %654 = vmatpush.bf16.msra.mxu0 %v508
  %655 = vmatpush.bf16.msra.mxu0 %v507
  %656 = vmatpush.bf16.msra.mxu0 %v506
  %657 = vmatpush.bf16.msra.mxu0 %v505
  %658 = vmatpush.bf16.msra.mxu0 %v504
  %659 = vmatpush.bf16.msra.mxu0 %v503
  %660 = vmatpush.bf16.msra.mxu0 %v502
  %661 = vmatpush.bf16.msra.mxu0 %v501
  %662 = vmatmul.bf16.gmra.mxu0 %v194
  %v663 = vpop.f32.mrf.mxu0
  %v664 = vadd.f32 %v651, %v663
  %v665 = vpop.f32.mrf.mxu0
  %666 = vdwg.mxu0
  %667 = vmatpush.bf16.msra.mxu0 %v516
  %668 = vmatpush.bf16.msra.mxu0 %v515
  %669 = vmatpush.bf16.msra.mxu0 %v514
  %670 = vmatpush.bf16.msra.mxu0 %v513
  %671 = vmatpush.bf16.msra.mxu0 %v512
  %672 = vmatpush.bf16.msra.mxu0 %v511
  %673 = vmatpush.bf16.msra.mxu0 %v510
  %674 = vmatpush.bf16.msra.mxu0 %v509
  %675 = vmatmul.bf16.gmra.mxu0 %v195
  %v676 = vpop.f32.mrf.mxu0
  %v677 = vadd.f32 %v664, %v676
  %v678 = vpop.f32.mrf.mxu0
  %679 = vdwg.mxu0
  %680 = vmatpush.bf16.msra.mxu0 %v524
  %681 = vmatpush.bf16.msra.mxu0 %v523
  %682 = vmatpush.bf16.msra.mxu0 %v522
  %683 = vmatpush.bf16.msra.mxu0 %v521
  %684 = vmatpush.bf16.msra.mxu0 %v520
  %685 = vmatpush.bf16.msra.mxu0 %v519
  %686 = vmatpush.bf16.msra.mxu0 %v518
  %687 = vmatpush.bf16.msra.mxu0 %v517
  %688 = vmatmul.bf16.gmra.mxu0 %v196
  %v689 = vpop.f32.mrf.mxu0
  %v690 = vadd.f32 %v677, %v689
  %v691 = vpop.f32.mrf.mxu0
  %692 = vdwg.mxu0
  %v693 = vadd.f32 %v44, %v690
  %694 = vst [vmem:[#allocation2] sm:$0xff] %v693
  // Predicated region
  $region50: #{multimodal_forward.1} parent=0 // pred_check
    %p695 = pneg %p39
  $region51: #{multimodal_forward.1} parent=0 // pred_check_branch
    %697 = sbr.rel (%p695) target = $region53
  $region52: #{multimodal_forward.1} parent=0 // pred_region
    %v698 = vld [vmem:[%s0] sm:$0xf]
    %v699 = vld [vmem:[%s2] sm:$0xf]
    %v700 = vld [vmem:[%s2 + $0x4] sm:$0xf]
    %v701 = vld [vmem:[%s2 + $0x8] sm:$0xf]
    %v702 = vld [vmem:[%s2 + $0xc] sm:$0xf]
    %v703 = vld [vmem:[%s3] sm:$0x1]
    %v705 = vperm.slane %v703, 0
    %v711 = vunpack.c.l.b16 %v699
    %v712 = vunpack.c.l.b16 %v700
    %v713 = vunpack.c.l.b16 %v701
    %v714 = vunpack.c.l.b16 %v702
    %v715 = vpack.c.b16 %v712, %v711
    %v716 = vpack.c.b16 %v714, %v713
    %vm719 = vcmask 261120
    %v721 = vsel %vm719, %v698, 0
    %723 = vmatpush.bf16.msra.mxu0 0
    %724 = vmatpush.bf16.msra.mxu0 0
    %725 = vmatpush.bf16.msra.mxu0 0
    %726 = vmatpush.bf16.msra.mxu0 0
    %727 = vmatpush.bf16.msra.mxu0 0
    %728 = vmatpush.bf16.msra.mxu0 0
    %729 = vmatpush.bf16.msra.mxu0 %v716
    %730 = vmatpush.bf16.msra.mxu0 %v715
    %731 = vmatmul.bf16.gmra.mxu0 %v721
    %v732 = vpop.f32.mrf.mxu0
    %v733 = vadd.f32 %v705, %v732
    %v734 = vpop.f32.mrf.mxu0
    %735 = vdwg.mxu0
    %v736 = vtanh.pop %v733
    %v737 = vpack.c.bf16 %v736, %v736
    %v738 = vld [vmem:[%s4] sm:$0xf]
    %v739 = vld [vmem:[%s4 + $0x4] sm:$0xf]
    %v740 = vld [vmem:[%s4 + $0x8] sm:$0xf]
    %v741 = vld [vmem:[%s4 + $0xc] sm:$0xf]
    %v742 = vld [vmem:[%s5] sm:$0x1]
    %v744 = vperm.slane %v742, 0
    %v750 = vunpack.c.l.b16 %v738
    %v751 = vunpack.c.l.b16 %v739
    %v752 = vunpack.c.l.b16 %v740
    %v753 = vunpack.c.l.b16 %v741
    %v754 = vpack.c.b16 %v751, %v750
    %v755 = vpack.c.b16 %v753, %v752
    %v759 = vsel %vm719, %v737, 0
    %761 = vmatpush.bf16.msra.mxu0 0
    %762 = vmatpush.bf16.msra.mxu0 0
    %763 = vmatpush.bf16.msra.mxu0 0
    %764 = vmatpush.bf16.msra.mxu0 0
    %765 = vmatpush.bf16.msra.mxu0 0
    %766 = vmatpush.bf16.msra.mxu0 0
    %767 = vmatpush.bf16.msra.mxu0 %v755
    %768 = vmatpush.bf16.msra.mxu0 %v754
    %769 = vmatmul.bf16.gmra.mxu0 %v759
    %v770 = vpop.f32.mrf.mxu0
    %v771 = vadd.f32 %v744, %v770
    %v772 = vpop.f32.mrf.mxu0
    %773 = vdwg.mxu0
    %v774 = vld [vmem:[#allocation2] sm:$0xff]
    %v775 = vld [vmem:[%s7] sm:$0x1]
    %v777 = vperm.slane %v775, 0
    %v779 = vadd.f32 %v774, %v777
    %v780 = vmax.f32 %v771, 0.0
    %v781 = vpack.c.bf16 %v780, %v780
    %v782 = vmax.f32 %v779, 0.0
    %v783 = vpack.c.bf16 %v782, %v782
    %v784 = vld [vmem:[%s8] sm:$0xf]
    %v785 = vld [vmem:[%s8 + $0x4] sm:$0xf]
    %v786 = vld [vmem:[%s8 + $0x8] sm:$0xf]
    %v787 = vld [vmem:[%s8 + $0xc] sm:$0xf]
    %v788 = vld [vmem:[%s8 + $0x10] sm:$0xf]
    %v789 = vld [vmem:[%s8 + $0x14] sm:$0xf]
    %v790 = vld [vmem:[%s8 + $0x18] sm:$0xf]
    %v791 = vld [vmem:[%s8 + $0x1c] sm:$0xf]
    %v792 = vld [vmem:[%s8 + $0x20] sm:$0xf]
    %v793 = vld [vmem:[%s8 + $0x24] sm:$0xf]
    %v794 = vld [vmem:[%s8 + $0x28] sm:$0xf]
    %v795 = vld [vmem:[%s8 + $0x2c] sm:$0xf]
    %v796 = vld [vmem:[%s8 + $0x30] sm:$0xf]
    %v797 = vld [vmem:[%s8 + $0x34] sm:$0xf]
    %v798 = vld [vmem:[%s8 + $0x38] sm:$0xf]
    %v799 = vld [vmem:[%s8 + $0x3c] sm:$0xf]
    %v800 = vld [vmem:[%s9] sm:$0xf]
    %v801 = vld [vmem:[%s9 + $0x4] sm:$0xf]
    %v802 = vld [vmem:[%s9 + $0x8] sm:$0xf]
    %v803 = vld [vmem:[%s9 + $0xc] sm:$0xf]
    %v804 = vld [vmem:[%s9 + $0x10] sm:$0xf]
    %v805 = vld [vmem:[%s9 + $0x14] sm:$0xf]
    %v806 = vld [vmem:[%s9 + $0x18] sm:$0xf]
    %v807 = vld [vmem:[%s9 + $0x1c] sm:$0xf]
    %v808 = vld [vmem:[%s9 + $0x20] sm:$0xf]
    %v809 = vld [vmem:[%s9 + $0x24] sm:$0xf]
    %v810 = vld [vmem:[%s9 + $0x28] sm:$0xf]
    %v811 = vld [vmem:[%s9 + $0x2c] sm:$0xf]
    %v812 = vld [vmem:[%s9 + $0x30] sm:$0xf]
    %v813 = vld [vmem:[%s9 + $0x34] sm:$0xf]
    %v814 = vld [vmem:[%s9 + $0x38] sm:$0xf]
    %v815 = vld [vmem:[%s9 + $0x3c] sm:$0xf]
    %v832 = vunpack.c.l.b16 %v800
    %v833 = vunpack.c.l.b16 %v801
    %v834 = vunpack.c.l.b16 %v802
    %v835 = vunpack.c.l.b16 %v803
    %v836 = vunpack.c.l.b16 %v804
    %v837 = vunpack.c.l.b16 %v805
    %v838 = vunpack.c.l.b16 %v806
    %v839 = vunpack.c.l.b16 %v807
    %v840 = vunpack.c.l.b16 %v808
    %v841 = vunpack.c.l.b16 %v809
    %v842 = vunpack.c.l.b16 %v810
    %v843 = vunpack.c.l.b16 %v811
    %v844 = vunpack.c.l.b16 %v812
    %v845 = vunpack.c.l.b16 %v813
    %v846 = vunpack.c.l.b16 %v814
    %v847 = vunpack.c.l.b16 %v815
    %v848 = vpack.c.b16 %v833, %v832
    %v849 = vpack.c.b16 %v835, %v834
    %v850 = vpack.c.b16 %v837, %v836
    %v851 = vpack.c.b16 %v839, %v838
    %v852 = vpack.c.b16 %v841, %v840
    %v853 = vpack.c.b16 %v843, %v842
    %v854 = vpack.c.b16 %v845, %v844
    %v855 = vpack.c.b16 %v847, %v846
    %864 = vmatpush.bf16.msra.mxu0 %v855
    %865 = vmatpush.bf16.msra.mxu0 %v854
    %866 = vmatpush.bf16.msra.mxu0 %v853
    %867 = vmatpush.bf16.msra.mxu0 %v852
    %868 = vmatpush.bf16.msra.mxu0 %v851
    %869 = vmatpush.bf16.msra.mxu0 %v850
    %870 = vmatpush.bf16.msra.mxu0 %v849
    %871 = vmatpush.bf16.msra.mxu0 %v848
    %872 = vmatmul.bf16.gmra.mxu0 %v783
    %v873 = vpop.f32.mrf.mxu0
    %v874 = vadd.f32 0.0, %v873
    %v875 = vpop.f32.mrf.mxu0
    %876 = vdwg.mxu0
    %v893 = vunpack.c.l.b16 %v784
    %v894 = vunpack.c.l.b16 %v785
    %v895 = vunpack.c.l.b16 %v786
    %v896 = vunpack.c.l.b16 %v787
    %v897 = vunpack.c.l.b16 %v788
    %v898 = vunpack.c.l.b16 %v789
    %v899 = vunpack.c.l.b16 %v790
    %v900 = vunpack.c.l.b16 %v791
    %v901 = vunpack.c.l.b16 %v792
    %v902 = vunpack.c.l.b16 %v793
    %v903 = vunpack.c.l.b16 %v794
    %v904 = vunpack.c.l.b16 %v795
    %v905 = vunpack.c.l.b16 %v796
    %v906 = vunpack.c.l.b16 %v797
    %v907 = vunpack.c.l.b16 %v798
    %v908 = vunpack.c.l.b16 %v799
    %v909 = vpack.c.b16 %v894, %v893
    %v910 = vpack.c.b16 %v896, %v895
    %v911 = vpack.c.b16 %v898, %v897
    %v912 = vpack.c.b16 %v900, %v899
    %v913 = vpack.c.b16 %v902, %v901
    %v914 = vpack.c.b16 %v904, %v903
    %v915 = vpack.c.b16 %v906, %v905
    %v916 = vpack.c.b16 %v908, %v907
    %925 = vmatpush.bf16.msra.mxu0 %v916
    %926 = vmatpush.bf16.msra.mxu0 %v915
    %927 = vmatpush.bf16.msra.mxu0 %v914
    %928 = vmatpush.bf16.msra.mxu0 %v913
    %929 = vmatpush.bf16.msra.mxu0 %v912
    %930 = vmatpush.bf16.msra.mxu0 %v911
    %931 = vmatpush.bf16.msra.mxu0 %v910
    %932 = vmatpush.bf16.msra.mxu0 %v909
    %933 = vmatmul.bf16.gmra.mxu0 %v781
    %v934 = vpop.f32.mrf.mxu0
    %v935 = vadd.f32 %v874, %v934
    %v936 = vpop.f32.mrf.mxu0
    %937 = vdwg.mxu0
    %v938 = vld [vmem:[%s10] sm:$0x1]
    %v940 = vperm.slane %v938, 0
    %v942 = vadd.f32 %v935, %v940
    %943 = vst [vmem:[%s11] sm:$0xff] %v942
  $region53: #{multimodal_forward.1} parent=0 // pred_fallthru
    _
  // Predicated region
  $region54: #{multimodal_forward.1} parent=0 // pred_check
    _
  $region55: #{multimodal_forward.1} parent=0 // pred_check_branch
    %945 = sbr.rel (0) target = $region57
  $region56: #{multimodal_forward.1} parent=0 // pred_region
    _
  $region57: #{multimodal_forward.1} parent=0 // pred_fallthru
    _
  // Predicated region
  $region58: #{multimodal_forward.1} parent=0 // pred_check
    _
  $region59: #{multimodal_forward.1} parent=0 // pred_check_branch
    %947 = sbr.rel (0) target = $region61
  $region60: #{multimodal_forward.1} parent=0 // pred_region
    _
  $region61: #{multimodal_forward.1} parent=0 // pred_fallthru
    _

</llo_original>
